<compile_context>
chip_gen: v7x
topology: tpu7x:2x2x1
jax: 0.10.0
libtpu: 0.0.40
codegen_flags: <defaults>
</compile_context>

<pallas_src>
import jax
import jax.numpy as jnp
from jax.experimental import pallas as pl
from jax.experimental.pallas import tpu as pltpu


def _dma_copy_kernel(x_hbm, o_hbm, sem):
    # Single whole-buffer HBM -> HBM DMA: this IS the reshape's data path.
    cp = pltpu.make_async_copy(x_hbm, o_hbm, sem)
    cp.start()
    cp.wait()


def _choose_slab(n):
    """Largest multiple-of-128 divisor of n (capped) -> lane-dense 2D slab."""
    upper = min(n, 16384)
    upper -= upper % 128
    cols = None
    for c in range(upper, 0, -128):
        if n % c == 0:
            cols = c
            break
    if cols is None:
        # n has no multiple-of-128 divisor: fall back to a single row.
        # Fine for the DMA path (no VMEM residency requirement).
        cols = n
    return n // cols, cols


def unflatten(x, size):
    """Pallas equivalent of torch.Tensor.view(*size)."""
    size = tuple(int(d) for d in size)
    n = x.size
    if -1 in size:
        known = 1
        for d in size:
            if d != -1:
                known *= d
        size = tuple(d if d != -1 else n // known for d in size)
    total = 1
    for d in size:
        total *= d
    assert n == total, f"cannot view {x.shape} as {size}"

    # Row-major flatten to a lane-dense 2D slab (order preserved).
    rows, cols = _choose_slab(n)
    x2d = x.reshape(rows, cols)

    # TODO(synk): for a true .view() the copy itself is redundant (reshape is
    # metadata-only); the kernel is kept so the data path is a Pallas op.
    out2d = pl.pallas_call(
        _dma_copy_kernel,
        out_shape=jax.ShapeDtypeStruct((rows, cols), x.dtype),
        in_specs=[pl.BlockSpec(memory_space=pl.ANY)],
        out_specs=pl.BlockSpec(memory_space=pl.ANY),
        scratch_shapes=[pltpu.SemaphoreType.DMA(())],
    )(x2d)

    # Row-major reshape to the requested size — matches torch .view().
    return out2d.reshape(size)


if __name__ == "__main__":
    # Module config: Unflatten((2, 4, 16, 8)) -> expects a (2, 512) input,
    # i.e. flattened features unflattened back to (N, C, H, W).
    target_size = (2, 4, 16, 8)

    key = jax.random.PRNGKey(0)
    x = jax.random.normal(key, (2, 512), dtype=jnp.float32)

    y = unflatten(x, target_size)
    y = jax.block_until_ready(y)

    # Reference: row-major reshape (== torch .view on a contiguous tensor).
    y_ref = jnp.reshape(x, target_size)
    assert y.shape == target_size, y.shape
    assert y.dtype == x.dtype
    assert bool(jnp.array_equal(y, y_ref))

    print("KERNEL_OK")
</pallas_src>

<mosaic_0001>
module attributes {stable_mosaic.version = 11 : i64} {
  func.func @_dma_copy_kernel(%arg0: memref<1x1024xf32, #tpu.memory_space<any>>, %arg1: memref<1x1024xf32, #tpu.memory_space<any>>, %arg2: memref<!tpu.dma_semaphore, #tpu.memory_space<semaphore_mem>>) attributes {dimension_semantics = [], scalar_prefetch = 0 : i64, scratch_operands = 1 : i64, tpu.core_type = #tpu.core_type<tc>} {
    tpu.enqueue_dma source(%arg0 : memref<1x1024xf32, #tpu.memory_space<any>>) target(%arg1 : memref<1x1024xf32, #tpu.memory_space<any>>) target_semaphore(%arg2 : memref<!tpu.dma_semaphore, #tpu.memory_space<semaphore_mem>>)
    tpu.wait_dma2 semaphore(%arg2 : memref<!tpu.dma_semaphore, #tpu.memory_space<semaphore_mem>>) src(%arg0 : memref<1x1024xf32, #tpu.memory_space<any>>) dst(%arg1 : memref<1x1024xf32, #tpu.memory_space<any>>)
    return
  }
}

</mosaic_0001>

<llo_original>
// kernel: tpu_custom_call.1
$region0: #{tpu_custom_call.1}
  #allocation0 [shape = 'u32[]', space=smem, size = 0x4, offset = 0x4, fixed_abs, tag = 'smem constant byte address 0x4 - core index']
  #allocation1 [shape = 'u32[144,128]{1,0:T(1,128)}', space=vmem, size = 0x12000, scoped, tag = 'internal scratch']
  #allocation2 [shape = 's32[1]{0}', space=sflag, size = 0x4, scoped, tag = 'scratch operand']
  #allocation3 [shape = 's32[]', space=sflag, size = 0x4, offset = 0, fixed_abs, tag = 'sflag constant byte address 0x0 - dummy sync flag']
  #allocation4 [shape = 'u32[0]{0}', space=smem, size = 0, offset = 0, fixed_abs, tag = 'smem constant byte address 0x0 - null']
  %s0 = inlined_call_operand.hbm [shape: f32[1,1024], index: 0, kind: input, shape index: {}]
  %s1 = inlined_call_operand.hbm [shape: f32[1,1024], index: 1, kind: output, shape index: {}]
  %s2 = sld [smem:[#allocation0]]
  $region2: #{tpu_custom_call.1} parent=0
    _
  %s4 = ssub.s32 1, %s2
  %s5 = scalar_select 0, %s4, %s2
  %s7 = sshll.u32 1, 14
  %s8 = sxor.u32 4294967295, %s7
  %s11 = sshll.u32 3, 24
  %s12 = sxor.u32 4294967295, %s11
  %s13 = sand.u32 0, %s12
  %s15 = sor.u32 %s13, 0
  %18 = dma.general %s0, 128, %s1, [#allocation2], [#allocation3], [#allocation4], %s15, 0
  %s19 = smul.u32 1, 8
  %s20 = sshll.u32 %s19, 4
  %21 = dma.done [#allocation2], %s20
  %22 = vsyncmov [#allocation2]
  %s23 = vpop.sfrf %22
  %p24 = scmp.eq.s32.totalorder %s23, 0
  %p25 = pneg %p24
  %27 = shalt.err (%p25)

</llo_original>
